<compile_context>
chip_gen: v6e
topology: v6e:2x2x1
jax: 0.10.0
libtpu: 0.0.40
codegen_flags: <defaults>
</compile_context>

<pallas_src>
import functools

import jax
import jax.numpy as jnp
from jax.experimental import pallas as pl
from jax.experimental.pallas import tpu as pltpu

_MASK_VALUE = -1e30  # large negative finite value: exp underflows to exactly 0


def _supcon_kernel(q_ref, k_ref, labr_ref, labc_ref, o_ref,
                   m_scr, l_scr, psum_scr, pcnt_scr,
                   *, inv_temp, scale):
    i = pl.program_id(0)          # anchor (row) tile          -> "parallel"
    j = pl.program_id(1)          # contrast (column) tile     -> reduction
    tq = q_ref.shape[0]
    tk = k_ref.shape[0]

    # Reset per-row accumulators at the start of every row tile.
    @pl.when(j == 0)
    def _():
        m_scr[...] = jnp.full_like(m_scr, _MASK_VALUE)
        l_scr[...] = jnp.zeros_like(l_scr)
        psum_scr[...] = jnp.zeros_like(psum_scr)
        pcnt_scr[...] = jnp.zeros_like(pcnt_scr)

    # Similarity tile: contraction over the last dim of both operands
    # (A @ A^T form -> no transpose materialized; bf16 MXU, f32 accumulate).
    sim = jax.lax.dot_general(
        q_ref[...], k_ref[...], (((1,), (1,)), ((), ())),
        preferred_element_type=jnp.float32) * jnp.float32(inv_temp)   # (TQ, TK)

    # Self-exclusion (the module's logits_mask) + positive mask, built per tile
    # from global row / column indices and the tiny label vectors.
    row_g = i * tq + jax.lax.broadcasted_iota(jnp.int32, (tq, 1), 0)
    col_g = j * tk + jax.lax.broadcasted_iota(jnp.int32, (1, tk), 1)
    not_self = row_g != col_g                                    # (TQ, TK)
    pos = jnp.logical_and(labr_ref[...] == labc_ref[...], not_self)

    # Online logsumexp over the non-self columns (masked entries -> exp == 0).
    sim_ns = jnp.where(not_self, sim, jnp.float32(_MASK_VALUE))
    m_new = jnp.maximum(m_scr[...], jnp.max(sim_ns, axis=1, keepdims=True))
    alpha = jnp.exp(m_scr[...] - m_new)
    p = jnp.exp(sim_ns - m_new)
    l_scr[...] = alpha * l_scr[...] + jnp.sum(p, axis=1, keepdims=True)
    m_scr[...] = m_new

    # Positive-pair accumulators (linear -> no rescaling needed).
    posf = pos.astype(jnp.float32)
    psum_scr[...] += jnp.sum(posf * sim, axis=1, keepdims=True)
    pcnt_scr[...] += jnp.sum(posf, axis=1, keepdims=True)

    # Finalize this row tile: per-anchor loss; scalar mean is done outside.
    @pl.when(j == pl.num_programs(1) - 1)
    def _():
        lse = m_scr[...] + jnp.log(l_scr[...])
        mean_pos = psum_scr[...] / pcnt_scr[...]
        o_ref[...] = jnp.float32(scale) * (lse - mean_pos)


def _pick_tile(total, pref, quantum):
    """Largest tile <= pref that is a multiple of `quantum` and divides `total`;
    falls back to the full extent (exempt from the (8,128) block rule)."""
    t = min(pref, total)
    t -= t % quantum
    while t >= quantum:
        if total % t == 0:
            return t
        t -= quantum
    return total


def supcon_loss(features, labels=None, mask=None, *,
                temperature=0.07, contrast_mode='all', base_temperature=0.07,
                block_q=256, block_k=512, bf16_matmul=True):
    """SupConLoss.forward(features, labels) -> scalar loss (Pallas TPU kernel)."""
    if features.ndim < 3:
        raise ValueError('`features` needs to be [bsz, n_views, ...], '
                         'at least 3 dimensions are required')
    if features.ndim > 3:
        features = features.reshape(features.shape[0], features.shape[1], -1)
    if labels is not None and mask is not None:
        raise ValueError('Cannot define both `labels` and `mask`')
    if mask is not None:
        # TODO(synk): an arbitrary (bsz, bsz) mask needs a per-tile gather of
        # mask values; only the labels / default identity-mask paths are here.
        raise NotImplementedError('explicit `mask` is not supported by the kernel')

    bsz, n_views, dim = features.shape
    n = bsz * n_views
    if labels is None:
        lab_b = jnp.arange(bsz, dtype=jnp.int32)   # identity mask == distinct labels
    else:
        lab_b = jnp.asarray(labels, dtype=jnp.int32).reshape(-1)
        if lab_b.shape[0] != bsz:
            raise ValueError('Num of labels does not match num of features')

    feat_dtype = jnp.bfloat16 if bf16_matmul else jnp.float32
    if contrast_mode == 'all':
        # Loss is invariant to the ordering of the contrast rows: use the free
        # (B,V,D)->(B*V,D) reshape instead of materializing cat(unbind(dim=1)).
        feats = features.reshape(n, dim).astype(feat_dtype)
        anchors = feats
        lab_full = jnp.repeat(lab_b, n_views)      # label of row b*V + v
        num_anchor = n
        lab_row = lab_full
    elif contrast_mode == 'one':
        # Contrast rows need view-major ordering; anchors are view 0 (bsz rows).
        feats = jnp.transpose(features, (1, 0, 2)).reshape(n, dim).astype(feat_dtype)
        anchors = feats[:bsz]
        lab_full = jnp.tile(lab_b, n_views)        # label of row v*B + b
        num_anchor = bsz
        lab_row = lab_b
    else:
        raise ValueError('Unknown mode: {}'.format(contrast_mode))

    lab_row = lab_row.reshape(num_anchor, 1)
    lab_col = lab_full.reshape(1, n)

    tq = _pick_tile(num_anchor, block_q, 16 if bf16_matmul else 8)
    tk = _pick_tile(n, block_k, 128)
    grid = (num_anchor // tq, n // tk)

    kern = functools.partial(
        _supcon_kernel,
        inv_temp=1.0 / float(temperature),
        scale=float(temperature) / float(base_temperature))

    row_loss = pl.pallas_call(
        kern,
        out_shape=jax.ShapeDtypeStruct((num_anchor, 1), jnp.float32),
        grid_spec=pltpu.PrefetchScalarGridSpec(
            num_scalar_prefetch=0,
            grid=grid,
            in_specs=[
                pl.BlockSpec((tq, dim), lambda i, j: (i, 0)),   # anchor row tile
                pl.BlockSpec((tk, dim), lambda i, j: (j, 0)),   # contrast col tile
                pl.BlockSpec((tq, 1), lambda i, j: (i, 0)),     # anchor-row labels
                pl.BlockSpec((1, tk), lambda i, j: (0, j)),     # contrast-col labels
            ],
            out_specs=pl.BlockSpec((tq, 1), lambda i, j: (i, 0)),
            scratch_shapes=[pltpu.VMEM((tq, 1), jnp.float32)] * 4,
        ),
        compiler_params=pltpu.CompilerParams(
            dimension_semantics=("parallel", "arbitrary")),
    )(anchors, feats, lab_row, lab_col)

    # Final O(A) reduction in XLA (per-row-tile partial outputs keep row tiles
    # independent -> megacore-safe).
    return jnp.mean(row_loss)


def _reference(features, labels=None, temperature=0.07,
               contrast_mode='all', base_temperature=0.07):
    """Pure-JAX mirror of the PyTorch SupConLoss.forward (f32, for checking)."""
    feats = features
    if feats.ndim > 3:
        feats = feats.reshape(feats.shape[0], feats.shape[1], -1)
    bsz, n_views = feats.shape[0], feats.shape[1]
    if labels is None:
        mask_b = jnp.eye(bsz, dtype=jnp.float32)
    else:
        lab = jnp.asarray(labels).reshape(-1, 1)
        mask_b = (lab == lab.T).astype(jnp.float32)
    contrast = jnp.transpose(feats, (1, 0, 2)).reshape(n_views * bsz, -1)
    if contrast_mode == 'one':
        anchor, anchor_count = feats[:, 0], 1
    else:
        anchor, anchor_count = contrast, n_views
    adc = (anchor @ contrast.T) / temperature
    logits = adc - jnp.max(adc, axis=1, keepdims=True)
    a_rows, n_cols = anchor_count * bsz, n_views * bsz
    mask_f = jnp.tile(mask_b, (anchor_count, n_views))
    logits_mask = 1.0 - (jnp.arange(a_rows)[:, None]
                         == jnp.arange(n_cols)[None, :]).astype(jnp.float32)
    mask_f = mask_f * logits_mask
    exp_logits = jnp.exp(logits) * logits_mask
    log_prob = logits - jnp.log(exp_logits.sum(1, keepdims=True))
    mean_log_prob_pos = (mask_f * log_prob).sum(1) / mask_f.sum(1)
    loss = -(temperature / base_temperature) * mean_log_prob_pos
    return loss.mean()


if __name__ == "__main__":
    key = jax.random.PRNGKey(0)
    k1, k2, k3, k4 = jax.random.split(key, 4)

    # Case 1: default SupCon (labels=None -> identity mask), tiny shape.
    B, V, D = 4, 2, 32
    f1 = jax.random.normal(k1, (B, V, D), jnp.float32)
    f1 = f1 / jnp.linalg.norm(f1, axis=-1, keepdims=True)     # typical SupCon input
    out1 = supcon_loss(f1)
    jax.block_until_ready(out1)
    ref1 = _reference(f1)
    assert jnp.allclose(out1, ref1, rtol=5e-2, atol=5e-2), (out1, ref1)

    # Case 2: labels + multi-tile grid (exercises the online-logsumexp path
    # and the pipelined contrast-tile reduction).
    B2, V2, D2 = 128, 2, 128
    f2 = jax.random.normal(k2, (B2, V2, D2), jnp.float32)
    f2 = f2 / jnp.linalg.norm(f2, axis=-1, keepdims=True)
    lab2 = jax.random.randint(k3, (B2,), 0, 10, dtype=jnp.int32)
    out2 = supcon_loss(f2, labels=lab2, block_q=64, block_k=128)
    jax.block_until_ready(out2)
    ref2 = _reference(f2, labels=lab2)
    assert jnp.allclose(out2, ref2, rtol=5e-2, atol=5e-2), (out2, ref2)

    # Case 3: contrast_mode='one' (anchors = view 0 only).
    B3, V3, D3 = 8, 2, 32
    f3 = jax.random.normal(k4, (B3, V3, D3), jnp.float32)
    f3 = f3 / jnp.linalg.norm(f3, axis=-1, keepdims=True)
    out3 = supcon_loss(f3, contrast_mode='one')
    jax.block_until_ready(out3)
    ref3 = _reference(f3, contrast_mode='one')
    assert jnp.allclose(out3, ref3, rtol=5e-2, atol=5e-2), (out3, ref3)

    print("KERNEL_OK")
</pallas_src>

<mosaic_0001>
module attributes {stable_mosaic.version = 11 : i64} {
  func.func @_supcon_kernel(%arg0: i32, %arg1: i32, %arg2: memref<8x32xbf16, #tpu.memory_space<vmem>>, %arg3: memref<8x32xbf16, #tpu.memory_space<vmem>>, %arg4: memref<8x1xi32, #tpu.memory_space<vmem>>, %arg5: memref<1x8xi32, #tpu.memory_space<vmem>>, %arg6: memref<8x1xf32, #tpu.memory_space<vmem>>, %arg7: memref<8x1xf32, #tpu.memory_space<vmem>>, %arg8: memref<8x1xf32, #tpu.memory_space<vmem>>, %arg9: memref<8x1xf32, #tpu.memory_space<vmem>>, %arg10: memref<8x1xf32, #tpu.memory_space<vmem>>) attributes {dimension_semantics = [#tpu.dimension_semantics<parallel>, #tpu.dimension_semantics<arbitrary>], iteration_bounds = array<i64: 1, 1>, scalar_prefetch = 0 : i64, scratch_operands = 4 : i64, tpu.core_type = #tpu.core_type<tc>, window_params = [{transform_indices = @transform_0, window_bounds = array<i64: 8, 32>}, {transform_indices = @transform_1, window_bounds = array<i64: 8, 32>}, {transform_indices = @transform_2, window_bounds = array<i64: 8, 1>}, {transform_indices = @transform_3, window_bounds = array<i64: 1, 8>}, {transform_indices = @transform_4, window_bounds = array<i64: 8, 1>}]} {
    %c0_i32 = arith.constant 0 : i32
    %0 = arith.cmpi eq, %arg1, %c0_i32 : i32
    %1 = arith.extui %0 : i1 to i32
    %c0_i32_0 = arith.constant 0 : i32
    %2 = arith.cmpi ne, %1, %c0_i32_0 : i32
    scf.if %2 {
      %cst_35 = arith.constant -1.000000e+30 : f32
      %60 = vector.broadcast %cst_35 : f32 to vector<8x1xf32>
      %c0_36 = arith.constant 0 : index
      %c0_37 = arith.constant 0 : index
      %61 = vector.load %arg7[%c0_36, %c0_37] : memref<8x1xf32, #tpu.memory_space<vmem>>, vector<8x1xf32>
      tpu.vector_store %arg7[%c0_36, %c0_37], %60 {strides = array<i32>} : memref<8x1xf32, #tpu.memory_space<vmem>>, vector<8x1xf32>,
      %cst_38 = arith.constant 0.000000e+00 : f32
      %62 = vector.broadcast %cst_38 : f32 to vector<8x1xf32>
      %c0_39 = arith.constant 0 : index
      %c0_40 = arith.constant 0 : index
      %63 = vector.load %arg8[%c0_39, %c0_40] : memref<8x1xf32, #tpu.memory_space<vmem>>, vector<8x1xf32>
      tpu.vector_store %arg8[%c0_39, %c0_40], %62 {strides = array<i32>} : memref<8x1xf32, #tpu.memory_space<vmem>>, vector<8x1xf32>,
      %cst_41 = arith.constant 0.000000e+00 : f32
      %64 = vector.broadcast %cst_41 : f32 to vector<8x1xf32>
      %c0_42 = arith.constant 0 : index
      %c0_43 = arith.constant 0 : index
      %65 = vector.load %arg9[%c0_42, %c0_43] : memref<8x1xf32, #tpu.memory_space<vmem>>, vector<8x1xf32>
      tpu.vector_store %arg9[%c0_42, %c0_43], %64 {strides = array<i32>} : memref<8x1xf32, #tpu.memory_space<vmem>>, vector<8x1xf32>,
      %cst_44 = arith.constant 0.000000e+00 : f32
      %66 = vector.broadcast %cst_44 : f32 to vector<8x1xf32>
      %c0_45 = arith.constant 0 : index
      %c0_46 = arith.constant 0 : index
      %67 = vector.load %arg10[%c0_45, %c0_46] : memref<8x1xf32, #tpu.memory_space<vmem>>, vector<8x1xf32>
      tpu.vector_store %arg10[%c0_45, %c0_46], %66 {strides = array<i32>} : memref<8x1xf32, #tpu.memory_space<vmem>>, vector<8x1xf32>,
    } else {
    }
    %c0 = arith.constant 0 : index
    %c0_1 = arith.constant 0 : index
    %3 = vector.load %arg2[%c0, %c0_1] : memref<8x32xbf16, #tpu.memory_space<vmem>>, vector<8x32xbf16>
    %c0_2 = arith.constant 0 : index
    %c0_3 = arith.constant 0 : index
    %4 = vector.load %arg3[%c0_2, %c0_3] : memref<8x32xbf16, #tpu.memory_space<vmem>>, vector<8x32xbf16>
    %cst = arith.constant dense<0.000000e+00> : vector<8x8xf32>
    %5 = tpu.matmul %3, %4, %cst {dimension_numbers = #tpu.dot_dimension_numbers<[1], [1], [0], [0], [0, 0, 1, 0], [], []>} : vector<8x32xbf16>, vector<8x32xbf16>, vector<8x8xf32> -> vector<8x8xf32>
    %cst_4 = arith.constant 14.2857141 : f32
    %6 = vector.broadcast %cst_4 : f32 to vector<8x8xf32>
    %7 = arith.mulf %5, %6 : vector<8x8xf32>
    %c8_i32 = arith.constant 8 : i32
    %8 = arith.muli %arg0, %c8_i32 : i32
    %9 = tpu.iota {dimensions = array<i32: 0>} : vector<8x1xi32>
    %10 = vector.broadcast %8 : i32 to vector<8x1xi32>
    %11 = arith.addi %10, %9 : vector<8x1xi32>
    %c8_i32_5 = arith.constant 8 : i32
    %12 = arith.muli %arg1, %c8_i32_5 : i32
    %13 = tpu.iota {dimensions = array<i32: 1>} : vector<1x8xi32>
    %14 = vector.broadcast %12 : i32 to vector<1x8xi32>
    %15 = arith.addi %14, %13 : vector<1x8xi32>
    %16 = vector.broadcast %11 : vector<8x1xi32> to vector<8x8xi32>
    %17 = vector.broadcast %15 : vector<1x8xi32> to vector<8x8xi32>
    %18 = arith.cmpi ne, %16, %17 : vector<8x8xi32>
    %c0_6 = arith.constant 0 : index
    %c0_7 = arith.constant 0 : index
    %19 = vector.load %arg4[%c0_6, %c0_7] : memref<8x1xi32, #tpu.memory_space<vmem>>, vector<8x1xi32>
    %c0_8 = arith.constant 0 : index
    %c0_9 = arith.constant 0 : index
    %20 = vector.load %arg5[%c0_8, %c0_9] : memref<1x8xi32, #tpu.memory_space<vmem>>, vector<1x8xi32>
    %21 = vector.broadcast %19 : vector<8x1xi32> to vector<8x8xi32>
    %22 = vector.broadcast %20 : vector<1x8xi32> to vector<8x8xi32>
    %23 = arith.cmpi eq, %21, %22 : vector<8x8xi32>
    %24 = arith.andi %23, %18 : vector<8x8xi1>
    %cst_10 = arith.constant -1.000000e+30 : f32
    %25 = vector.broadcast %cst_10 : f32 to vector<8x8xf32>
    %26 = arith.select %18, %7, %25 : vector<8x8xi1>, vector<8x8xf32>
    %c0_11 = arith.constant 0 : index
    %c0_12 = arith.constant 0 : index
    %27 = vector.load %arg7[%c0_11, %c0_12] : memref<8x1xf32, #tpu.memory_space<vmem>>, vector<8x1xf32>
    %cst_13 = arith.constant dense<0xFF800000> : vector<8xf32>
    %28 = vector.multi_reduction <maximumf>, %26, %cst_13 [1] : vector<8x8xf32> to vector<8xf32>
    %29 = vector.shape_cast %28 : vector<8xf32> to vector<8x1xf32>
    %30 = arith.maximumf %27, %29 : vector<8x1xf32>
    %c0_14 = arith.constant 0 : index
    %c0_15 = arith.constant 0 : index
    %31 = vector.load %arg7[%c0_14, %c0_15] : memref<8x1xf32, #tpu.memory_space<vmem>>, vector<8x1xf32>
    %32 = arith.subf %31, %30 : vector<8x1xf32>
    %33 = math.exp %32 : vector<8x1xf32>
    %34 = vector.broadcast %30 : vector<8x1xf32> to vector<8x8xf32>
    %35 = arith.subf %26, %34 : vector<8x8xf32>
    %36 = math.exp %35 : vector<8x8xf32>
    %c0_16 = arith.constant 0 : index
    %c0_17 = arith.constant 0 : index
    %37 = vector.load %arg8[%c0_16, %c0_17] : memref<8x1xf32, #tpu.memory_space<vmem>>, vector<8x1xf32>
    %38 = arith.mulf %33, %37 : vector<8x1xf32>
    %cst_18 = arith.constant dense<0.000000e+00> : vector<8xf32>
    %39 = vector.multi_reduction <add>, %36, %cst_18 [1] : vector<8x8xf32> to vector<8xf32>
    %40 = vector.shape_cast %39 : vector<8xf32> to vector<8x1xf32>
    %41 = arith.addf %38, %40 : vector<8x1xf32>
    %c0_19 = arith.constant 0 : index
    %c0_20 = arith.constant 0 : index
    %42 = vector.load %arg8[%c0_19, %c0_20] : memref<8x1xf32, #tpu.memory_space<vmem>>, vector<8x1xf32>
    tpu.vector_store %arg8[%c0_19, %c0_20], %41 {strides = array<i32>} : memref<8x1xf32, #tpu.memory_space<vmem>>, vector<8x1xf32>,
    %c0_21 = arith.constant 0 : index
    %c0_22 = arith.constant 0 : index
    %43 = vector.load %arg7[%c0_21, %c0_22] : memref<8x1xf32, #tpu.memory_space<vmem>>, vector<8x1xf32>
    tpu.vector_store %arg7[%c0_21, %c0_22], %30 {strides = array<i32>} : memref<8x1xf32, #tpu.memory_space<vmem>>, vector<8x1xf32>,
    %44 = arith.extui %24 : vector<8x8xi1> to vector<8x8xi32>
    %45 = arith.sitofp %44 : vector<8x8xi32> to vector<8x8xf32>
    %c0_23 = arith.constant 0 : index
    %c0_24 = arith.constant 0 : index
    %46 = vector.load %arg9[%c0_23, %c0_24] : memref<8x1xf32, #tpu.memory_space<vmem>>, vector<8x1xf32>
    %47 = arith.mulf %45, %7 : vector<8x8xf32>
    %cst_25 = arith.constant dense<0.000000e+00> : vector<8xf32>
    %48 = vector.multi_reduction <add>, %47, %cst_25 [1] : vector<8x8xf32> to vector<8xf32>
    %49 = vector.shape_cast %48 : vector<8xf32> to vector<8x1xf32>
    %50 = arith.addf %46, %49 : vector<8x1xf32>
    %c0_26 = arith.constant 0 : index
    %c0_27 = arith.constant 0 : index
    %51 = vector.load %arg9[%c0_26, %c0_27] : memref<8x1xf32, #tpu.memory_space<vmem>>, vector<8x1xf32>
    tpu.vector_store %arg9[%c0_26, %c0_27], %50 {strides = array<i32>} : memref<8x1xf32, #tpu.memory_space<vmem>>, vector<8x1xf32>,
    %c0_28 = arith.constant 0 : index
    %c0_29 = arith.constant 0 : index
    %52 = vector.load %arg10[%c0_28, %c0_29] : memref<8x1xf32, #tpu.memory_space<vmem>>, vector<8x1xf32>
    %cst_30 = arith.constant dense<0.000000e+00> : vector<8xf32>
    %53 = vector.multi_reduction <add>, %45, %cst_30 [1] : vector<8x8xf32> to vector<8xf32>
    %54 = vector.shape_cast %53 : vector<8xf32> to vector<8x1xf32>
    %55 = arith.addf %52, %54 : vector<8x1xf32>
    %c0_31 = arith.constant 0 : index
    %c0_32 = arith.constant 0 : index
    %56 = vector.load %arg10[%c0_31, %c0_32] : memref<8x1xf32, #tpu.memory_space<vmem>>, vector<8x1xf32>
    tpu.vector_store %arg10[%c0_31, %c0_32], %55 {strides = array<i32>} : memref<8x1xf32, #tpu.memory_space<vmem>>, vector<8x1xf32>,
    %c0_i32_33 = arith.constant 0 : i32
    %57 = arith.cmpi eq, %arg1, %c0_i32_33 : i32
    %58 = arith.extui %57 : i1 to i32
    %c0_i32_34 = arith.constant 0 : i32
    %59 = arith.cmpi ne, %58, %c0_i32_34 : i32
    scf.if %59 {
      %c0_35 = arith.constant 0 : index
      %c0_36 = arith.constant 0 : index
      %60 = vector.load %arg7[%c0_35, %c0_36] : memref<8x1xf32, #tpu.memory_space<vmem>>, vector<8x1xf32>
      %c0_37 = arith.constant 0 : index
      %c0_38 = arith.constant 0 : index
      %61 = vector.load %arg8[%c0_37, %c0_38] : memref<8x1xf32, #tpu.memory_space<vmem>>, vector<8x1xf32>
      %62 = math.log %61 : vector<8x1xf32>
      %63 = arith.addf %60, %62 : vector<8x1xf32>
      %c0_39 = arith.constant 0 : index
      %c0_40 = arith.constant 0 : index
      %64 = vector.load %arg9[%c0_39, %c0_40] : memref<8x1xf32, #tpu.memory_space<vmem>>, vector<8x1xf32>
      %c0_41 = arith.constant 0 : index
      %c0_42 = arith.constant 0 : index
      %65 = vector.load %arg10[%c0_41, %c0_42] : memref<8x1xf32, #tpu.memory_space<vmem>>, vector<8x1xf32>
      %66 = arith.divf %64, %65 : vector<8x1xf32>
      %67 = arith.subf %63, %66 : vector<8x1xf32>
      %cst_43 = arith.constant 1.000000e+00 : f32
      %68 = vector.broadcast %cst_43 : f32 to vector<8x1xf32>
      %69 = arith.mulf %68, %67 : vector<8x1xf32>
      %c0_44 = arith.constant 0 : index
      %c0_45 = arith.constant 0 : index
      %70 = vector.load %arg6[%c0_44, %c0_45] : memref<8x1xf32, #tpu.memory_space<vmem>>, vector<8x1xf32>
      tpu.vector_store %arg6[%c0_44, %c0_45], %69 {strides = array<i32>} : memref<8x1xf32, #tpu.memory_space<vmem>>, vector<8x1xf32>,
    } else {
    }
    return
  }
  func.func @transform_0(%arg0: i32, %arg1: i32) -> (i32, i32) {
    %c0_i32 = arith.constant 0 : i32
    %c0_i32_0 = arith.constant 0 : i32
    return %arg0, %c0_i32 : i32, i32
  }
  func.func @transform_1(%arg0: i32, %arg1: i32) -> (i32, i32) {
    %c0_i32 = arith.constant 0 : i32
    %c0_i32_0 = arith.constant 0 : i32
    return %arg1, %c0_i32 : i32, i32
  }
  func.func @transform_2(%arg0: i32, %arg1: i32) -> (i32, i32) {
    %c0_i32 = arith.constant 0 : i32
    %c0_i32_0 = arith.constant 0 : i32
    return %arg0, %c0_i32 : i32, i32
  }
  func.func @transform_3(%arg0: i32, %arg1: i32) -> (i32, i32) {
    %c0_i32 = arith.constant 0 : i32
    %c0_i32_0 = arith.constant 0 : i32
    return %c0_i32, %arg1 : i32, i32
  }
  func.func @transform_4(%arg0: i32, %arg1: i32) -> (i32, i32) {
    %c0_i32 = arith.constant 0 : i32
    %c0_i32_0 = arith.constant 0 : i32
    return %arg0, %c0_i32 : i32, i32
  }
}

</mosaic_0001>

<llo_original>
// kernel: tpu_custom_call.1
$region0: #{tpu_custom_call.1}
  #allocation0 [shape = 'u32[]', space=smem, size = 0x4, offset = 0x4, fixed_abs, tag = 'smem constant byte address 0x4 - core index']
  #allocation1 [shape = 'u32[144,128]{1,0:T(1,128)}', space=vmem, size = 0x12000, scoped, tag = 'internal scratch']
  #allocation2 [shape = 'f32[8,1]{1,0:T(8,128)}', space=vmem, size = 0x1000, scoped, tag = 'scratch operand']
  #allocation3 [shape = 'f32[8,1]{1,0:T(8,128)}', space=vmem, size = 0x1000, scoped, tag = 'scratch operand']
  #allocation4 [shape = 'f32[8,1]{1,0:T(8,128)}', space=vmem, size = 0x1000, scoped, tag = 'scratch operand']
  #allocation5 [shape = 'f32[8,1]{1,0:T(8,128)}', space=vmem, size = 0x1000, scoped, tag = 'scratch operand']
  %s0 = inlined_call_operand.vmem [shape: bf16[8,32], index: 0, kind: input, shape index: {}]
  %s1 = inlined_call_operand.vmem [shape: bf16[8,32], index: 1, kind: input, shape index: {}]
  %s2 = inlined_call_operand.vmem [shape: s32[8,1], index: 2, kind: input, shape index: {}]
  %s3 = inlined_call_operand.vmem [shape: s32[1,8], index: 3, kind: input, shape index: {}]
  %s4 = inlined_call_operand.vmem [shape: f32[8,1], index: 4, kind: output, shape index: {}]
  %s5 = sld [smem:[#allocation0]]
  $region34: #{tpu_custom_call.1} parent=0
    _
  %s7 = ssub.s32 1, %s5
  %s8 = scalar_select 0, %s7, %s5
  // Predicated region
  $region2: #{tpu_custom_call.1} parent=0 // pred_check
    _
  $region3: #{tpu_custom_call.1} parent=0 // pred_check_branch
    %10 = sbr.rel (0) target = $region5
  $region4: #{tpu_custom_call.1} parent=0 // pred_region
    _
  $region5: #{tpu_custom_call.1} parent=0 // pred_fallthru
    _
  // Predicated region
  $region6: #{tpu_custom_call.1} parent=0 // pred_check
    _
  $region7: #{tpu_custom_call.1} parent=0 // pred_check_branch
    %12 = sbr.rel (0) target = $region9
  $region8: #{tpu_custom_call.1} parent=0 // pred_region
    _
  $region9: #{tpu_custom_call.1} parent=0 // pred_fallthru
    _
  // Predicated region
  $region10: #{tpu_custom_call.1} parent=0 // pred_check
    _
  $region11: #{tpu_custom_call.1} parent=0 // pred_check_branch
    %14 = sbr.rel (0) target = $region13
  $region12: #{tpu_custom_call.1} parent=0 // pred_region
    _
  $region13: #{tpu_custom_call.1} parent=0 // pred_fallthru
    _
  // Predicated region
  $region14: #{tpu_custom_call.1} parent=0 // pred_check
    _
  $region15: #{tpu_custom_call.1} parent=0 // pred_check_branch
    %16 = sbr.rel (0) target = $region17
  $region16: #{tpu_custom_call.1} parent=0 // pred_region
    _
  $region17: #{tpu_custom_call.1} parent=0 // pred_fallthru
    _
  %p18 = scmp.eq.s32.totalorder 0, 0
  // Predicated region
  $region18: #{tpu_custom_call.1} parent=0 // pred_check
    %p19 = pneg %p18
  $region19: #{tpu_custom_call.1} parent=0 // pred_check_branch
    %21 = sbr.rel (%p19) target = $region21
  $region20: #{tpu_custom_call.1} parent=0 // pred_region
    %vm22 = vcmask 7168
    %23 = vst.msk [vmem:[#allocation2] sm:$0xff] %vm22, -1e+30
    %24 = vst.msk [vmem:[#allocation3] sm:$0xff] %vm22, 0.0
    %25 = vst.msk [vmem:[#allocation4] sm:$0xff] %vm22, 0.0
    %26 = vst.msk [vmem:[#allocation5] sm:$0xff] %vm22, 0.0
  $region21: #{tpu_custom_call.1} parent=0 // pred_fallthru
    _
  %v27 = vld [vmem:[%s0] sm:$0xf]
  %v28 = vld [vmem:[%s1] sm:$0xf]
  %vm29 = vcmask 261120
  %v31 = vsel %vm29, %v27, 0
  %v34 = vsel %vm29, %v28, 0
  %36 = vmatprep.subr.bf16.mxu0 0
  %37 = vmatpush1.bf16.xpose.msra.mxu0 0
  %38 = vmatprep.subr.bf16.mxu0 0
  %39 = vmatpush1.bf16.xpose.msra.mxu0 0
  %40 = vmatprep.subr.bf16.mxu0 0
  %41 = vmatpush1.bf16.xpose.msra.mxu0 0
  %42 = vmatprep.subr.bf16.mxu0 0
  %43 = vmatpush1.bf16.xpose.msra.mxu0 0
  %44 = vmatprep.subr.bf16.mxu0 0
  %45 = vmatpush1.bf16.xpose.msra.mxu0 0
  %46 = vmatprep.subr.bf16.mxu0 0
  %47 = vmatpush1.bf16.xpose.msra.mxu0 0
  %48 = vmatprep.subr.bf16.mxu0 0
  %49 = vmatpush1.bf16.xpose.msra.mxu0 0
  %50 = vmatprep.subr.bf16.mxu0 0
  %51 = vmatpush1.bf16.xpose.msra.mxu0 %v34
  %52 = vmatprep.subr.bf16.mxu0 0
  %53 = vmatpush2.bf16.xpose.msra.mxu0 0
  %54 = vmatprep.subr.bf16.mxu0 0
  %55 = vmatpush2.bf16.xpose.msra.mxu0 0
  %56 = vmatprep.subr.bf16.mxu0 0
  %57 = vmatpush2.bf16.xpose.msra.mxu0 0
  %58 = vmatprep.subr.bf16.mxu0 0
  %59 = vmatpush2.bf16.xpose.msra.mxu0 0
  %60 = vmatprep.subr.bf16.mxu0 0
  %61 = vmatpush2.bf16.xpose.msra.mxu0 0
  %62 = vmatprep.subr.bf16.mxu0 0
  %63 = vmatpush2.bf16.xpose.msra.mxu0 0
  %64 = vmatprep.subr.bf16.mxu0 0
  %65 = vmatpush2.bf16.xpose.msra.mxu0 0
  %66 = vmatprep.subr.bf16.mxu0 0
  %67 = vmatpush2.bf16.xpose.msra.mxu0 0
  %68 = vmatprep.mubr.bf16.mxu0 0
  %69 = vmatmul.mubr.bf16.gmra.mxu0 %v31
  %v70 = vpop.f32.mrf.mxu0
  %v71 = vadd.f32 0.0, %v70
  %v72 = vpop.f32.mrf.mxu0
  %v73 = vpop.f32.mrf.mxu0
  %v74 = vpop.f32.mrf.mxu0
  %75 = vdwg.mxu0
  %v76 = vmul.f32 %v71, 14.285714
  %s77 = smul.u32 0, 8
  %v78 = vlaneseq
  %v79 = vshrl.u32 %v78, 7
  %v80 = vstv %s77
  %v81 = vadd.s32 %v80, %v79
  %s82 = smul.u32 0, 8
  %v83 = vlaneseq
  %v84 = vand.u32 %v83, 127
  %v85 = vstv %s82
  %v86 = vadd.s32 %v85, %v84
  %vm87 = vcmp.ne.s32.totalorder %v81, %v86
  %v88 = vld [vmem:[%s2] sm:$0xff]
  %v89 = vld [vmem:[%s3] sm:$0x1]
  %90 = vset.pattern.permute.xlu0 0
  %91 = vperm.xlu0 %90, %v88
  %v92 = vpop.permute.xlu0 %91
  %v93 = vlaneseq
  %v94 = vshrl.u32 %v93, 7
  %v95 = vsub.s32 0, %v94
  %v96 = vrot.slane %v89, %v95
  %vm97 = vcmp.eq.s32.totalorder %v92, %v96
  %vm98 = vmand %vm97, %vm87
  %v99 = vsel %vm87, %v76, -1e+30
  %v100 = vld [vmem:[#allocation2] sm:$0xff]
  %vm101 = vcmask 64512
  %v102 = vsel %vm101, %v99, -inf
  %103 = vmax.xlane.f32.xlu0 %v102
  %v104 = vpop.xlane.xlu0 %103
  %v105 = vmax.f32 %v100, %v104
  %v106 = vsub.f32 %v100, %v105
  %v107 = vmul.f32 %v106, 1.442695
  %v108 = vpow.pop %v107
  %110 = vset.pattern.permute.xlu0 0
  %111 = vperm.xlu0 %110, %v105
  %v112 = vpop.permute.xlu0 %111
  %v114 = vsub.f32 %v99, %v112
  %v115 = vmul.f32 %v114, 1.442695
  %v116 = vpow.pop %v115
  %v117 = vld [vmem:[#allocation3] sm:$0xff]
  %v118 = vmul.f32 %v108, %v117
  %v119 = vsel %vm101, %v116, 0.0
  %120 = vadd.xlane.f32.xlu0 %v119
  %v121 = vpop.xlane.xlu0 %120
  %v122 = vadd.f32 %v118, %v121
  %vm123 = vcmask 7168
  %124 = vst.msk [vmem:[#allocation3] sm:$0xff] %vm123, %v122
  %125 = vst.msk [vmem:[#allocation2] sm:$0xff] %vm123, %v105
  %v126 = vsel %vm98, 1, 0
  %v127 = vcvt.s32.f32 %v126
  %v128 = vld [vmem:[#allocation4] sm:$0xff]
  %v129 = vmul.f32 %v127, %v76
  %v130 = vsel %vm101, %v129, 0.0
  %131 = vadd.xlane.f32.xlu0 %v130
  %v132 = vpop.xlane.xlu0 %131
  %v133 = vadd.f32 %v128, %v132
  %134 = vst.msk [vmem:[#allocation4] sm:$0xff] %vm123, %v133
  %v135 = vld [vmem:[#allocation5] sm:$0xff]
  %v136 = vsel %vm101, %v127, 0.0
  %137 = vadd.xlane.f32.xlu0 %v136
  %v138 = vpop.xlane.xlu0 %137
  %v139 = vadd.f32 %v135, %v138
  %140 = vst.msk [vmem:[#allocation5] sm:$0xff] %vm123, %v139
  // Predicated region
  $region22: #{tpu_custom_call.1} parent=0 // pred_check
    %p141 = pneg %p18
  $region23: #{tpu_custom_call.1} parent=0 // pred_check_branch
    %143 = sbr.rel (%p141) target = $region25
  $region24: #{tpu_custom_call.1} parent=0 // pred_region
    %v144 = vld [vmem:[#allocation2] sm:$0xff]
    %v145 = vld [vmem:[#allocation3] sm:$0xff]
    %v146 = vlog2.pop %v145
    %v147 = vmul.f32 %v146, 0.6931472
    %v148 = vadd.f32 %v144, %v147
    %v149 = vld [vmem:[#allocation4] sm:$0xff]
    %v150 = vld [vmem:[#allocation5] sm:$0xff]
    %v151 = vrcp.pop %v150
    %v152 = vmul.f32 %v149, %v151
    %v153 = vsub.f32 %v148, %v152
    %154 = vst.msk [vmem:[%s4] sm:$0xff] %vm123, %v153
  $region25: #{tpu_custom_call.1} parent=0 // pred_fallthru
    _
  // Predicated region
  $region26: #{tpu_custom_call.1} parent=0 // pred_check
    _
  $region27: #{tpu_custom_call.1} parent=0 // pred_check_branch
    %156 = sbr.rel (0) target = $region29
  $region28: #{tpu_custom_call.1} parent=0 // pred_region
    _
  $region29: #{tpu_custom_call.1} parent=0 // pred_fallthru
    _
  // Predicated region
  $region30: #{tpu_custom_call.1} parent=0 // pred_check
    _
  $region31: #{tpu_custom_call.1} parent=0 // pred_check_branch
    %158 = sbr.rel (0) target = $region33
  $region32: #{tpu_custom_call.1} parent=0 // pred_region
    _
  $region33: #{tpu_custom_call.1} parent=0 // pred_fallthru
    _

</llo_original>
